<compile_context>
chip_gen: v6e
topology: v6e:2x2x1
jax: 0.10.0
libtpu: 0.0.40
codegen_flags: <defaults>
</compile_context>

<pallas_src>
import jax
import jax.numpy as jnp
from jax.experimental import pallas as pl
from jax.experimental.pallas import tpu as pltpu

_LANE = 128
# f32 elements per array per tile: 256K elems = 1 MiB per buffer. With 3 inputs
# + 1 scores output, double-buffered, that is ~8 MiB of scoped VMEM -> fits the
# default scoped limit on v5e (16 MiB) and v6e/v7x (32 MiB) with headroom.
_MAX_TILE_ELEMS = 256 * 1024


def _choose_layout(n):
    """Pick a lane-dense (rows, C) view and a row-tile size for a flat length-n vector."""
    for c in (1024, 512, 256, 128):
        if n % c == 0:
            rows = n // c
            break
    else:
        # TODO(synk): no padding path for N % 128 != 0; padded elements would
        # have to be masked out of both means.
        raise ValueError(f"N={n} must be a multiple of {_LANE}")
    max_tr = max(8, (_MAX_TILE_ELEMS // c) // 8 * 8)   # multiple of 8 sublanes
    tile_rows = rows if rows <= max_tr else max_tr      # ragged last tile is masked
    return rows, c, tile_rows


def _make_kernel(margin, rows, tile_rows, has_weights):
    margin = float(margin)

    def _hinge(p_ref, n_ref):
        p = p_ref[...].astype(jnp.float32)
        n = n_ref[...].astype(jnp.float32)
        return jnp.maximum(margin + p - n, 0.0)

    def _mask_ragged(s):
        # Zero rows past the logical end (only the last tile can be ragged).
        if rows % tile_rows == 0:
            return s
        row0 = pl.program_id(0) * tile_rows
        rid = row0 + jax.lax.broadcasted_iota(jnp.int32, s.shape, 0)
        return jnp.where(rid < rows, s, 0.0)

    def _write(s, psum_ref, scores_ref):
        scores_ref[...] = s.astype(scores_ref.dtype)
        # Per-lane partial sums for this tile, pre-scaled by 1/8 and replicated
        # across 8 sublanes so the psum output block stays (8, 128)-aligned
        # (fully unmasked store).  The wrapper just does sum(psum)/N.
        colsum = jnp.sum(s, axis=0, keepdims=True) * 0.125
        psum_ref[...] = jnp.broadcast_to(colsum, psum_ref.shape)

    if has_weights:
        def kernel(inv_wmean_ref, p_ref, n_ref, w_ref, psum_ref, scores_ref):
            s = _hinge(p_ref, n_ref)
            s = s * (w_ref[...].astype(jnp.float32) * inv_wmean_ref[0, 0])
            s = _mask_ragged(s)
            _write(s, psum_ref, scores_ref)
    else:
        def kernel(p_ref, n_ref, psum_ref, scores_ref):
            s = _mask_ragged(_hinge(p_ref, n_ref))
            _write(s, psum_ref, scores_ref)

    return kernel


def margin_ranking_loss(p_enrgs, n_enrgs, weights=None, *, margin=1.0):
    """Pallas implementation of MarginRankingLoss.forward.

    Returns (mean_score: f32 scalar, scores: [N] in the energies' dtype).
    """
    n_elems = p_enrgs.shape[0]
    rows, c, tile_rows = _choose_layout(n_elems)
    num_tiles = pl.cdiv(rows, tile_rows)

    p2 = p_enrgs.reshape(rows, c)
    n2 = n_enrgs.reshape(rows, c)

    tile_spec = pl.BlockSpec((tile_rows, c), lambda i: (i, 0))
    psum_spec = pl.BlockSpec((8, c), lambda i: (i, 0))

    has_weights = weights is not None
    if has_weights:
        # Global weights mean hoisted out of the kernel: a tiled kernel only
        # sees per-tile data, so the global reduction must be precomputed.
        inv_wmean = (1.0 / jnp.mean(weights.astype(jnp.float32))).reshape(1, 1)
        inputs = [inv_wmean, p2, n2, weights.reshape(rows, c)]
        in_specs = [pl.BlockSpec(memory_space=pltpu.MemorySpace.SMEM),
                    tile_spec, tile_spec, tile_spec]
    else:
        inputs = [p2, n2]
        in_specs = [tile_spec, tile_spec]

    kernel = _make_kernel(margin, rows, tile_rows, has_weights)

    psum, scores2 = pl.pallas_call(
        kernel,
        grid=(num_tiles,),
        out_shape=(
            jax.ShapeDtypeStruct((num_tiles * 8, c), jnp.float32),  # partial sums
            jax.ShapeDtypeStruct((rows, c), p_enrgs.dtype),         # scores slab
        ),
        in_specs=in_specs,
        out_specs=(psum_spec, tile_spec),
        compiler_params=pltpu.CompilerParams(
            dimension_semantics=("parallel",)),
    )(*inputs)

    mean = jnp.sum(psum) / jnp.float32(n_elems)
    return mean, scores2.reshape(n_elems)


if __name__ == "__main__":
    key = jax.random.PRNGKey(0)
    k1, k2, k3 = jax.random.split(key, 3)

    N = 1024            # small batch of (positive, negative) energy pairs
    margin = 1.0

    p_enrgs = jax.random.normal(k1, (N,), dtype=jnp.float32)
    n_enrgs = jax.random.normal(k2, (N,), dtype=jnp.float32)
    weights = jax.random.uniform(k3, (N,), dtype=jnp.float32, minval=0.5, maxval=1.5)

    # --- unweighted path ---
    mean_u, scores_u = margin_ranking_loss(p_enrgs, n_enrgs, margin=margin)

    # --- weighted path ---
    mean_w, scores_w = margin_ranking_loss(p_enrgs, n_enrgs, weights, margin=margin)

    jax.block_until_ready((mean_u, scores_u, mean_w, scores_w))

    # reference check (plain JAX, same semantics as the PyTorch module)
    ref_u = jnp.maximum(margin + p_enrgs - n_enrgs, 0.0)
    ref_w = ref_u * weights / jnp.mean(weights)
    assert jnp.allclose(scores_u, ref_u, atol=1e-5, rtol=1e-5)
    assert jnp.allclose(mean_u, jnp.mean(ref_u), atol=1e-5, rtol=1e-5)
    assert jnp.allclose(scores_w, ref_w, atol=1e-5, rtol=1e-5)
    assert jnp.allclose(mean_w, jnp.mean(ref_w), atol=1e-5, rtol=1e-5)

    print("KERNEL_OK")
</pallas_src>

<mosaic_0001>
module attributes {stable_mosaic.version = 11 : i64} {
  func.func @kernel(%arg0: i32, %arg1: memref<1x1024xf32, #tpu.memory_space<vmem>>, %arg2: memref<1x1024xf32, #tpu.memory_space<vmem>>, %arg3: memref<8x1024xf32, #tpu.memory_space<vmem>>, %arg4: memref<1x1024xf32, #tpu.memory_space<vmem>>) attributes {dimension_semantics = [#tpu.dimension_semantics<parallel>], iteration_bounds = array<i64: 1>, scalar_prefetch = 0 : i64, scratch_operands = 0 : i64, tpu.core_type = #tpu.core_type<tc>, window_params = [{transform_indices = @transform_0, window_bounds = array<i64: 1, 1024>}, {transform_indices = @transform_1, window_bounds = array<i64: 1, 1024>}, {transform_indices = @transform_2, window_bounds = array<i64: 8, 1024>}, {transform_indices = @transform_3, window_bounds = array<i64: 1, 1024>}]} {
    %c0 = arith.constant 0 : index
    %c0_0 = arith.constant 0 : index
    %0 = vector.load %arg1[%c0, %c0_0] : memref<1x1024xf32, #tpu.memory_space<vmem>>, vector<1x1024xf32>
    %c0_1 = arith.constant 0 : index
    %c0_2 = arith.constant 0 : index
    %1 = vector.load %arg2[%c0_1, %c0_2] : memref<1x1024xf32, #tpu.memory_space<vmem>>, vector<1x1024xf32>
    %cst = arith.constant 1.000000e+00 : f32
    %2 = vector.broadcast %cst : f32 to vector<1x1024xf32>
    %3 = arith.addf %2, %0 : vector<1x1024xf32>
    %4 = arith.subf %3, %1 : vector<1x1024xf32>
    %cst_3 = arith.constant 0.000000e+00 : f32
    %5 = vector.broadcast %cst_3 : f32 to vector<1x1024xf32>
    %6 = arith.maximumf %4, %5 : vector<1x1024xf32>
    %c0_4 = arith.constant 0 : index
    %c0_5 = arith.constant 0 : index
    %7 = vector.load %arg4[%c0_4, %c0_5] : memref<1x1024xf32, #tpu.memory_space<vmem>>, vector<1x1024xf32>
    tpu.vector_store %arg4[%c0_4, %c0_5], %6 {strides = array<i32>} : memref<1x1024xf32, #tpu.memory_space<vmem>>, vector<1x1024xf32>,
    %cst_6 = arith.constant dense<0.000000e+00> : vector<1024xf32>
    %8 = vector.multi_reduction <add>, %6, %cst_6 [0] : vector<1x1024xf32> to vector<1024xf32>
    %9 = vector.shape_cast %8 : vector<1024xf32> to vector<1x1024xf32>
    %cst_7 = arith.constant 1.250000e-01 : f32
    %10 = vector.broadcast %cst_7 : f32 to vector<1x1024xf32>
    %11 = arith.mulf %9, %10 : vector<1x1024xf32>
    %12 = vector.shape_cast %11 : vector<1x1024xf32> to vector<1x1024xf32>
    %13 = vector.broadcast %12 : vector<1x1024xf32> to vector<8x1024xf32>
    %c0_8 = arith.constant 0 : index
    %c0_9 = arith.constant 0 : index
    %14 = vector.load %arg3[%c0_8, %c0_9] : memref<8x1024xf32, #tpu.memory_space<vmem>>, vector<8x1024xf32>
    tpu.vector_store %arg3[%c0_8, %c0_9], %13 {strides = array<i32>} : memref<8x1024xf32, #tpu.memory_space<vmem>>, vector<8x1024xf32>,
    return
  }
  func.func @transform_0(%arg0: i32) -> (i32, i32) {
    %c0_i32 = arith.constant 0 : i32
    %c0_i32_0 = arith.constant 0 : i32
    return %arg0, %c0_i32 : i32, i32
  }
  func.func @transform_1(%arg0: i32) -> (i32, i32) {
    %c0_i32 = arith.constant 0 : i32
    %c0_i32_0 = arith.constant 0 : i32
    return %arg0, %c0_i32 : i32, i32
  }
  func.func @transform_2(%arg0: i32) -> (i32, i32) {
    %c0_i32 = arith.constant 0 : i32
    %c0_i32_0 = arith.constant 0 : i32
    return %arg0, %c0_i32 : i32, i32
  }
  func.func @transform_3(%arg0: i32) -> (i32, i32) {
    %c0_i32 = arith.constant 0 : i32
    %c0_i32_0 = arith.constant 0 : i32
    return %arg0, %c0_i32 : i32, i32
  }
}

</mosaic_0001>

<llo_original>
// kernel: tpu_custom_call.1
$region0: #{tpu_custom_call.1}
  #allocation0 [shape = 'u32[]', space=smem, size = 0x4, offset = 0x4, fixed_abs, tag = 'smem constant byte address 0x4 - core index']
  #allocation1 [shape = 'u32[144,128]{1,0:T(1,128)}', space=vmem, size = 0x12000, scoped, tag = 'internal scratch']
  %s0 = inlined_call_operand.hbm [shape: f32[1,1024], index: 0, kind: input, shape index: {}]
  %s1 = inlined_call_operand.hbm [shape: f32[1,1024], index: 1, kind: input, shape index: {}]
  %s2 = inlined_call_operand.hbm [shape: f32[8,1024], index: 2, kind: output, shape index: {0}]
  %s3 = inlined_call_operand.hbm [shape: f32[1,1024], index: 3, kind: output, shape index: {1}]
  %4 = xla_tuple %s2, %s3
  %s5 = sld [smem:[#allocation0]]
  $region34: #{tpu_custom_call.1} parent=0
    _
  %s7 = ssub.s32 1, %s5
  %s8 = scalar_select 0, %s7, %s5
  $region1: #{tpu_custom_call.1} parent=0
    #allocation2 [shape = 'u8[4096]{0}', space=vmem, size = 0x1000, scoped, tag = 'input window, operand 0, single buffered']
    #allocation3 [shape = 's32[1]{0}', space=sflag, size = 0x4, scoped, tag = 'scoped memory for tpu_custom_call.1']
    #allocation4 [shape = 's32[1]{0}', space=sflag, size = 0x4, scoped, tag = 'scoped memory for tpu_custom_call.1']
    #allocation5 [shape = 'u8[4096]{0}', space=vmem, size = 0x1000, scoped, tag = 'input window, operand 1, single buffered']
    #allocation6 [shape = 's32[1]{0}', space=sflag, size = 0x4, scoped, tag = 'scoped memory for tpu_custom_call.1']
    #allocation7 [shape = 'u8[32768]{0}', space=vmem, size = 0x8000, scoped, tag = 'output window, operand 0, single buffered']
    #allocation8 [shape = 'u8[4096]{0}', space=vmem, size = 0x1000, scoped, tag = 'output window, operand 1, single buffered']
    #allocation9 [shape = 's32[1]{0}', space=sflag, size = 0x4, scoped, tag = 'scoped memory for tpu_custom_call.1']
    %9 = vsyncpa [#allocation3], 0
    %10 = vsyncpa [#allocation6], 0
    %11 = vsyncpa [#allocation4], 0
    %12 = vsyncpa [#allocation9], 0
    // Predicated region
    $region2: #{tpu_custom_call.1} parent=1 // pred_check
      _
    $region3: #{tpu_custom_call.1} parent=1 // pred_check_branch
      %14 = sbr.rel (0) target = $region5
    $region4: #{tpu_custom_call.1} parent=1 // pred_region
      %s16 = ssub.s32 128, 128
      %17 = vsyncadd [#allocation3], %s16
      %s19 = sshll.u32 [#allocation2], 4
      %s20 = int_to_ptr.vmem [resolvable:$true] %s19
      %22 = dma.hbm_to_vmem [thread:$0]  %s0, 128, %s20, [#allocation3]
    $region5: #{tpu_custom_call.1} parent=1 // pred_fallthru
      _
    // Predicated region
    $region6: #{tpu_custom_call.1} parent=1 // pred_check
      _
    $region7: #{tpu_custom_call.1} parent=1 // pred_check_branch
      %24 = sbr.rel (0) target = $region9
    $region8: #{tpu_custom_call.1} parent=1 // pred_region
      %s26 = ssub.s32 128, 128
      %27 = vsyncadd [#allocation6], %s26
      %s29 = sshll.u32 [#allocation5], 4
      %s30 = int_to_ptr.vmem [resolvable:$true] %s29
      %32 = dma.hbm_to_vmem [thread:$0]  %s1, 128, %s30, [#allocation6]
    $region9: #{tpu_custom_call.1} parent=1 // pred_fallthru
      _
    // Predicated region
    $region10: #{tpu_custom_call.1} parent=1 // pred_check
      _
    $region11: #{tpu_custom_call.1} parent=1 // pred_check_branch
      %34 = sbr.rel (0) target = $region13
    $region12: #{tpu_custom_call.1} parent=1 // pred_region
      %35 = dma.done [#allocation3], 128
    $region13: #{tpu_custom_call.1} parent=1 // pred_fallthru
      _
    // Predicated region
    $region14: #{tpu_custom_call.1} parent=1 // pred_check
      _
    $region15: #{tpu_custom_call.1} parent=1 // pred_check_branch
      %37 = sbr.rel (0) target = $region17
    $region16: #{tpu_custom_call.1} parent=1 // pred_region
      %38 = dma.done [#allocation6], 128
    $region17: #{tpu_custom_call.1} parent=1 // pred_fallthru
      _
    %v39 = vld [vmem:[#allocation2] sm:$0xff]
    %v40 = vld [vmem:[#allocation5] sm:$0xff]
    %v41 = vadd.f32 %v39, 1.0
    %v42 = vsub.f32 %v41, %v40
    %v43 = vmax.f32 %v42, 0.0
    %44 = vst [vmem:[#allocation8] sm:$0xff] %v43
    %v45 = vadd.f32 %v43, 0.0
    %v46 = vmul.f32 %v45, 0.125
    %v48 = vlaneseq
    %v49 = vshrl.u32 %v48, 7
    %v50 = vsub.s32 0, %v49
    %v51 = vrot.slane %v46, %v50
    %v52 = vlaneseq
    %v53 = vshrl.u32 %v52, 7
    %v54 = vsub.s32 1, %v53
    %v55 = vrot.slane %v46, %v54
    %v56 = vlaneseq
    %v57 = vshrl.u32 %v56, 7
    %v58 = vsub.s32 2, %v57
    %v59 = vrot.slane %v46, %v58
    %v60 = vlaneseq
    %v61 = vshrl.u32 %v60, 7
    %v62 = vsub.s32 3, %v61
    %v63 = vrot.slane %v46, %v62
    %v64 = vlaneseq
    %v65 = vshrl.u32 %v64, 7
    %v66 = vsub.s32 4, %v65
    %v67 = vrot.slane %v46, %v66
    %v68 = vlaneseq
    %v69 = vshrl.u32 %v68, 7
    %v70 = vsub.s32 5, %v69
    %v71 = vrot.slane %v46, %v70
    %v72 = vlaneseq
    %v73 = vshrl.u32 %v72, 7
    %v74 = vsub.s32 6, %v73
    %v75 = vrot.slane %v46, %v74
    %v76 = vlaneseq
    %v77 = vshrl.u32 %v76, 7
    %v78 = vsub.s32 7, %v77
    %v79 = vrot.slane %v46, %v78
    %88 = vst [vmem:[#allocation7] sm:$0xff] %v51
    %89 = vst [vmem:[#allocation7 + $0x8] sm:$0xff] %v55
    %90 = vst [vmem:[#allocation7 + $0x10] sm:$0xff] %v59
    %91 = vst [vmem:[#allocation7 + $0x18] sm:$0xff] %v63
    %92 = vst [vmem:[#allocation7 + $0x20] sm:$0xff] %v67
    %93 = vst [vmem:[#allocation7 + $0x28] sm:$0xff] %v71
    %94 = vst [vmem:[#allocation7 + $0x30] sm:$0xff] %v75
    %95 = vst [vmem:[#allocation7 + $0x38] sm:$0xff] %v79
    // Predicated region
    $region18: #{tpu_custom_call.1} parent=1 // pred_check
      _
    $region19: #{tpu_custom_call.1} parent=1 // pred_check_branch
      %97 = sbr.rel (0) target = $region21
    $region20: #{tpu_custom_call.1} parent=1 // pred_region
      %s99 = ssub.s32 1024, 1024
      %100 = vsyncadd [#allocation4], %s99
      %s102 = sshll.u32 [#allocation7], 4
      %s103 = int_to_ptr.vmem [resolvable:$true] %s102
      %105 = dma.vmem_to_hbm [thread:$0]  %s103, 1024, %s2, [#allocation4]
    $region21: #{tpu_custom_call.1} parent=1 // pred_fallthru
      _
    // Predicated region
    $region22: #{tpu_custom_call.1} parent=1 // pred_check
      _
    $region23: #{tpu_custom_call.1} parent=1 // pred_check_branch
      %107 = sbr.rel (0) target = $region25
    $region24: #{tpu_custom_call.1} parent=1 // pred_region
      %s109 = ssub.s32 128, 128
      %110 = vsyncadd [#allocation9], %s109
      %s112 = sshll.u32 [#allocation8], 4
      %s113 = int_to_ptr.vmem [resolvable:$true] %s112
      %115 = dma.vmem_to_hbm [thread:$0]  %s113, 128, %s3, [#allocation9]
    $region25: #{tpu_custom_call.1} parent=1 // pred_fallthru
      _
    // Predicated region
    $region26: #{tpu_custom_call.1} parent=1 // pred_check
      _
    $region27: #{tpu_custom_call.1} parent=1 // pred_check_branch
      %117 = sbr.rel (0) target = $region29
    $region28: #{tpu_custom_call.1} parent=1 // pred_region
      %118 = dma.done [#allocation4], 1024
    $region29: #{tpu_custom_call.1} parent=1 // pred_fallthru
      _
    // Predicated region
    $region30: #{tpu_custom_call.1} parent=1 // pred_check
      _
    $region31: #{tpu_custom_call.1} parent=1 // pred_check_branch
      %120 = sbr.rel (0) target = $region33
    $region32: #{tpu_custom_call.1} parent=1 // pred_region
      %121 = dma.done [#allocation9], 128
    $region33: #{tpu_custom_call.1} parent=1 // pred_fallthru
      _
    %122 = vsyncpa [#allocation3], 1
    %123 = vsyncpa [#allocation6], 1
    %124 = vsyncpa [#allocation4], 1
    %125 = vsyncpa [#allocation9], 1

</llo_original>
